<compile_context>
chip_gen: v7x
topology: tpu7x:2x2x1
jax: 0.10.0
libtpu: 0.0.40
codegen_flags: <defaults>
</compile_context>

<pallas_src>
import jax
import jax.numpy as jnp
from jax.experimental import pallas as pl
from jax.experimental.pallas import tpu as pltpu


def get_sinusoid_pos_encoding(M, C, dtype=jnp.float32):
    """Standard sinusoidal positional encoding table of shape (M, C)."""
    pos = jnp.arange(M, dtype=jnp.float32)[:, None]            # (M, 1)
    i = jnp.arange(C, dtype=jnp.float32)[None, :]              # (1, C)
    div = jnp.power(10000.0, (2.0 * jnp.floor(i / 2.0)) / C)   # (1, C)
    angle = pos / div                                          # (M, C)
    pe = jnp.where((jnp.arange(C)[None, :] % 2) == 0,
                   jnp.sin(angle), jnp.cos(angle))
    return pe.astype(dtype)


def _bottleneck_kernel(x_ref, mt_ref, w_ref, t1_ref, t2_ref, o_ref):
    # x_ref  : (BN, m1, C)  encoder-token batch tile
    # mt_ref : (BN, m2, C)  masked-token batch tile
    # w_ref  : (C, E)       projection weight (VMEM-resident, constant index_map)
    # t1_ref : (m1, E)      (pos @ W + b) rows [0, m1)    (VMEM-resident)
    # t2_ref : (m2, E)      (pos @ W + b) rows [m1, M)    (VMEM-resident)
    # o_ref  : (BN, M, E)   output batch tile, M = m1 + m2
    bn, m1, c = x_ref.shape
    _, m2, _ = mt_ref.shape
    e = w_ref.shape[1]
    w = w_ref[...]

    # Encoder-token segment -> output rows [0, m1).  Collapse (BN, m1) into one
    # tall LHS so the MXU sees a single (BN*m1, C) @ (C, E) matmul.
    y1 = jnp.dot(x_ref[...].reshape(bn * m1, c), w,
                 preferred_element_type=jnp.float32)           # (BN*m1, E)
    y1 = y1.reshape(bn, m1, e) + t1_ref[...][None]             # fold pos-enc + bias
    o_ref[:, :m1, :] = y1.astype(o_ref.dtype)

    # Masked-token segment -> output rows [m1, M).  Writing directly into the
    # output row range implements the concat with zero extra HBM traffic.
    y2 = jnp.dot(mt_ref[...].reshape(bn * m2, c), w,
                 preferred_element_type=jnp.float32)           # (BN*m2, E)
    y2 = y2.reshape(bn, m2, e) + t2_ref[...][None]
    o_ref[:, m1:, :] = y2.astype(o_ref.dtype)


def bottleneck_forward(x, masked_token, weight, bias, *, target_rows=512):
    """
    x            : (N, m1, C) float32
    masked_token : (N, m2, C) float32
    weight       : (C, E)     float32  (== torch Linear.weight.T)
    bias         : (E,)       float32
    returns      : (N, M, E)  float32, M = m1 + m2
    """
    N, m1, C = x.shape
    Nm, m2, Cm = masked_token.shape
    assert Nm == N and Cm == C
    M = m1 + m2
    E = weight.shape[1]
    itemsize = jnp.dtype(x.dtype).itemsize

    # Batch-independent fold: (x + pos) @ W + b  ==  x @ W + (pos @ W + b).
    pos = get_sinusoid_pos_encoding(M, C, dtype=jnp.float32)
    table = jnp.dot(pos, weight.astype(jnp.float32)) + bias.astype(jnp.float32)
    t1 = table[:m1].astype(x.dtype)          # rows for the encoder tokens
    t2 = table[m1:].astype(x.dtype)          # rows for the masked tokens

    # Batch tile: largest divisor of N whose row count (BN*M) stays <= target_rows
    # -> tall MXU LHS per step, per-step pipeline overhead amortized.
    BN = 1
    for d in range(1, N + 1):
        if N % d == 0 and d * M <= max(target_rows, M):
            BN = d
    grid = (N // BN,)

    cost = pl.CostEstimate(
        flops=2 * N * M * C * E,
        transcendentals=0,
        bytes_accessed=itemsize * (N * M * C + C * E + M * E + N * M * E),
    )

    out = pl.pallas_call(
        _bottleneck_kernel,
        out_shape=jax.ShapeDtypeStruct((N, M, E), x.dtype),
        grid_spec=pltpu.PrefetchScalarGridSpec(
            num_scalar_prefetch=0,
            grid=grid,
            in_specs=[
                pl.BlockSpec((BN, m1, C), lambda i: (i, 0, 0)),  # x batch tile
                pl.BlockSpec((BN, m2, C), lambda i: (i, 0, 0)),  # masked batch tile
                pl.BlockSpec((C, E), lambda i: (0, 0)),          # weight (resident)
                pl.BlockSpec((m1, E), lambda i: (0, 0)),         # pos@W+b, rows [0,m1)
                pl.BlockSpec((m2, E), lambda i: (0, 0)),         # pos@W+b, rows [m1,M)
            ],
            out_specs=pl.BlockSpec((BN, M, E), lambda i: (i, 0, 0)),
        ),
        compiler_params=pltpu.CompilerParams(
            dimension_semantics=("parallel",)),
        cost_estimate=cost,
    )(x, masked_token, weight, t1, t2)
    return out


def reference_forward(x, masked_token, weight, bias):
    """Pure-JAX reference matching the PyTorch module."""
    N, m1, C = x.shape
    _, m2, _ = masked_token.shape
    M = m1 + m2
    x_full = jnp.concatenate([x, masked_token], axis=1)
    x_full = x_full + get_sinusoid_pos_encoding(M, C, dtype=x.dtype)[None]
    return jnp.einsum("nmc,ce->nme", x_full, weight) + bias[None, None, :]


if __name__ == "__main__":
    # Small shapes consistent with the module's forward:
    #   x: (N, m1, C), masked_token: (N, m2, C), Linear(C -> emb_size)
    N, m1, m2 = 2, 8, 8
    C = 32          # in_dim  (patch_size*patch_size*3 in the real model)
    E = 64          # emb_size

    key = jax.random.PRNGKey(0)
    kx, km, kw, kb = jax.random.split(key, 4)
    x = jax.random.normal(kx, (N, m1, C), dtype=jnp.float32)
    masked_token = jax.random.normal(km, (N, m2, C), dtype=jnp.float32)

    # Deterministic parameter init (torch Linear: weight (E, C), bias (E,)).
    # Weight stored pre-transposed as (C, E) for the y = x @ W form.
    bound = 1.0 / jnp.sqrt(C)
    weight = jax.random.uniform(kw, (C, E), minval=-bound, maxval=bound,
                                dtype=jnp.float32)
    bias = jax.random.uniform(kb, (E,), minval=-bound, maxval=bound,
                              dtype=jnp.float32)

    fwd = jax.jit(bottleneck_forward)
    out = jax.block_until_ready(fwd(x, masked_token, weight, bias))

    ref = reference_forward(x, masked_token, weight, bias)
    assert out.shape == (N, m1 + m2, E)
    assert jnp.allclose(out, ref, atol=1e-4, rtol=1e-4), \
        float(jnp.max(jnp.abs(out - ref)))

    print("KERNEL_OK")
</pallas_src>

<mosaic_0001>
module attributes {stable_mosaic.version = 11 : i64} {
  func.func @_bottleneck_kernel(%arg0: i32, %arg1: memref<2x8x32xf32, #tpu.memory_space<vmem>>, %arg2: memref<2x8x32xf32, #tpu.memory_space<vmem>>, %arg3: memref<32x64xf32, #tpu.memory_space<vmem>>, %arg4: memref<8x64xf32, #tpu.memory_space<vmem>>, %arg5: memref<8x64xf32, #tpu.memory_space<vmem>>, %arg6: memref<2x16x64xf32, #tpu.memory_space<vmem>>) attributes {dimension_semantics = [#tpu.dimension_semantics<parallel>], iteration_bounds = array<i64: 1>, scalar_prefetch = 0 : i64, scratch_operands = 0 : i64, tpu.core_type = #tpu.core_type<tc>, window_params = [{transform_indices = @transform_0, window_bounds = array<i64: 2, 8, 32>}, {transform_indices = @transform_1, window_bounds = array<i64: 2, 8, 32>}, {pipeline_mode = #tpu.pipeline_mode<synchronous>, transform_indices = @transform_2, window_bounds = array<i64: 32, 64>}, {pipeline_mode = #tpu.pipeline_mode<synchronous>, transform_indices = @transform_3, window_bounds = array<i64: 8, 64>}, {pipeline_mode = #tpu.pipeline_mode<synchronous>, transform_indices = @transform_4, window_bounds = array<i64: 8, 64>}, {transform_indices = @transform_5, window_bounds = array<i64: 2, 16, 64>}]} {
    %c0 = arith.constant 0 : index
    %c0_0 = arith.constant 0 : index
    %0 = vector.load %arg3[%c0, %c0_0] : memref<32x64xf32, #tpu.memory_space<vmem>>, vector<32x64xf32>
    %c0_1 = arith.constant 0 : index
    %c0_2 = arith.constant 0 : index
    %c0_3 = arith.constant 0 : index
    %1 = vector.load %arg1[%c0_1, %c0_2, %c0_3] : memref<2x8x32xf32, #tpu.memory_space<vmem>>, vector<2x8x32xf32>
    %2 = vector.shape_cast %1 : vector<2x8x32xf32> to vector<16x32xf32>
    %cst = arith.constant dense<0.000000e+00> : vector<16x64xf32>
    %3 = tpu.matmul %2, %0, %cst {dimension_numbers = #tpu.dot_dimension_numbers<[1], [0], [0], [1], [0, 0, 1, 1], [], []>} : vector<16x32xf32>, vector<32x64xf32>, vector<16x64xf32> -> vector<16x64xf32>
    %4 = vector.shape_cast %3 : vector<16x64xf32> to vector<2x8x64xf32>
    %c0_4 = arith.constant 0 : index
    %c0_5 = arith.constant 0 : index
    %5 = vector.load %arg4[%c0_4, %c0_5] : memref<8x64xf32, #tpu.memory_space<vmem>>, vector<8x64xf32>
    %6 = vector.shape_cast %5 : vector<8x64xf32> to vector<1x8x64xf32>
    %7 = vector.broadcast %6 : vector<1x8x64xf32> to vector<2x8x64xf32>
    %8 = arith.addf %4, %7 : vector<2x8x64xf32>
    %c0_6 = arith.constant 0 : index
    %c0_7 = arith.constant 0 : index
    %c0_8 = arith.constant 0 : index
    %9 = vector.load %arg6[%c0_6, %c0_7, %c0_8] : memref<2x16x64xf32, #tpu.memory_space<vmem>>, vector<2x8x64xf32>
    tpu.vector_store %arg6[%c0_6, %c0_7, %c0_8], %8 {strides = array<i32>} : memref<2x16x64xf32, #tpu.memory_space<vmem>>, vector<2x8x64xf32>,
    %c0_9 = arith.constant 0 : index
    %c0_10 = arith.constant 0 : index
    %c0_11 = arith.constant 0 : index
    %10 = vector.load %arg2[%c0_9, %c0_10, %c0_11] : memref<2x8x32xf32, #tpu.memory_space<vmem>>, vector<2x8x32xf32>
    %11 = vector.shape_cast %10 : vector<2x8x32xf32> to vector<16x32xf32>
    %cst_12 = arith.constant dense<0.000000e+00> : vector<16x64xf32>
    %12 = tpu.matmul %11, %0, %cst_12 {dimension_numbers = #tpu.dot_dimension_numbers<[1], [0], [0], [1], [0, 0, 1, 1], [], []>} : vector<16x32xf32>, vector<32x64xf32>, vector<16x64xf32> -> vector<16x64xf32>
    %13 = vector.shape_cast %12 : vector<16x64xf32> to vector<2x8x64xf32>
    %c0_13 = arith.constant 0 : index
    %c0_14 = arith.constant 0 : index
    %14 = vector.load %arg5[%c0_13, %c0_14] : memref<8x64xf32, #tpu.memory_space<vmem>>, vector<8x64xf32>
    %15 = vector.shape_cast %14 : vector<8x64xf32> to vector<1x8x64xf32>
    %16 = vector.broadcast %15 : vector<1x8x64xf32> to vector<2x8x64xf32>
    %17 = arith.addf %13, %16 : vector<2x8x64xf32>
    %c0_15 = arith.constant 0 : index
    %c8 = arith.constant 8 : index
    %c0_16 = arith.constant 0 : index
    %18 = vector.load %arg6[%c0_15, %c8, %c0_16] : memref<2x16x64xf32, #tpu.memory_space<vmem>>, vector<2x8x64xf32>
    tpu.vector_store %arg6[%c0_15, %c8, %c0_16], %17 {strides = array<i32>} : memref<2x16x64xf32, #tpu.memory_space<vmem>>, vector<2x8x64xf32>,
    return
  }
  func.func @transform_0(%arg0: i32) -> (i32, i32, i32) {
    %c0_i32 = arith.constant 0 : i32
    %c0_i32_0 = arith.constant 0 : i32
    %c0_i32_1 = arith.constant 0 : i32
    return %arg0, %c0_i32, %c0_i32_0 : i32, i32, i32
  }
  func.func @transform_1(%arg0: i32) -> (i32, i32, i32) {
    %c0_i32 = arith.constant 0 : i32
    %c0_i32_0 = arith.constant 0 : i32
    %c0_i32_1 = arith.constant 0 : i32
    return %arg0, %c0_i32, %c0_i32_0 : i32, i32, i32
  }
  func.func @transform_2(%arg0: i32) -> (i32, i32) {
    %c0_i32 = arith.constant 0 : i32
    %c0_i32_0 = arith.constant 0 : i32
    %c0_i32_1 = arith.constant 0 : i32
    return %c0_i32, %c0_i32_0 : i32, i32
  }
  func.func @transform_3(%arg0: i32) -> (i32, i32) {
    %c0_i32 = arith.constant 0 : i32
    %c0_i32_0 = arith.constant 0 : i32
    %c0_i32_1 = arith.constant 0 : i32
    return %c0_i32, %c0_i32_0 : i32, i32
  }
  func.func @transform_4(%arg0: i32) -> (i32, i32) {
    %c0_i32 = arith.constant 0 : i32
    %c0_i32_0 = arith.constant 0 : i32
    %c0_i32_1 = arith.constant 0 : i32
    return %c0_i32, %c0_i32_0 : i32, i32
  }
  func.func @transform_5(%arg0: i32) -> (i32, i32, i32) {
    %c0_i32 = arith.constant 0 : i32
    %c0_i32_0 = arith.constant 0 : i32
    %c0_i32_1 = arith.constant 0 : i32
    return %arg0, %c0_i32, %c0_i32_0 : i32, i32, i32
  }
}

</mosaic_0001>

<llo_original>
// kernel: bottleneck_forward.1
$region0: #{bottleneck_forward.1}
  #allocation0 [shape = 'u32[]', space=smem, size = 0x4, offset = 0x4, fixed_abs, tag = 'smem constant byte address 0x4 - core index']
  #allocation1 [shape = 'u32[144,128]{1,0:T(1,128)}', space=vmem, size = 0x12000, scoped, tag = 'internal scratch']
  %s0 = inlined_call_operand.vmem [shape: f32[2,8,32], index: 0, kind: input, shape index: {}]
  %s1 = inlined_call_operand.vmem [shape: f32[2,8,32], index: 1, kind: input, shape index: {}]
  %s2 = inlined_call_operand.vmem [shape: f32[32,64], index: 2, kind: input, shape index: {}]
  %s3 = inlined_call_operand.vmem [shape: f32[8,64], index: 3, kind: input, shape index: {}]
  %s4 = inlined_call_operand.vmem [shape: f32[8,64], index: 4, kind: input, shape index: {}]
  %s5 = inlined_call_operand.hbm [shape: f32[2,16,64], index: 5, kind: output, shape index: {}]
  %s6 = sld [smem:[#allocation0]]
  $region30: #{bottleneck_forward.1} parent=0
    _
  %s8 = ssub.s32 1, %s6
  %s9 = scalar_select 0, %s8, %s6
  $region1: #{bottleneck_forward.1} parent=0
    #allocation2 [shape = 'u8[16384]{0}', space=vmem, size = 0x4000, scoped, tag = 'output window, operand 0, single buffered']
    #allocation3 [shape = 's32[1]{0}', space=sflag, size = 0x4, scoped, tag = 'scoped memory for bottleneck_forward.1']
    %10 = vsyncpa [#allocation3], 0
    // Predicated region
    $region2: #{bottleneck_forward.1} parent=1 // pred_check
      _
    $region3: #{bottleneck_forward.1} parent=1 // pred_check_branch
      %12 = sbr.rel (0) target = $region5
    $region4: #{bottleneck_forward.1} parent=1 // pred_region
      _
    $region5: #{bottleneck_forward.1} parent=1 // pred_fallthru
      _
    // Predicated region
    $region6: #{bottleneck_forward.1} parent=1 // pred_check
      _
    $region7: #{bottleneck_forward.1} parent=1 // pred_check_branch
      %14 = sbr.rel (0) target = $region9
    $region8: #{bottleneck_forward.1} parent=1 // pred_region
      _
    $region9: #{bottleneck_forward.1} parent=1 // pred_fallthru
      _
    // Predicated region
    $region10: #{bottleneck_forward.1} parent=1 // pred_check
      _
    $region11: #{bottleneck_forward.1} parent=1 // pred_check_branch
      %16 = sbr.rel (0) target = $region13
    $region12: #{bottleneck_forward.1} parent=1 // pred_region
      _
    $region13: #{bottleneck_forward.1} parent=1 // pred_fallthru
      _
    // Predicated region
    $region14: #{bottleneck_forward.1} parent=1 // pred_check
      _
    $region15: #{bottleneck_forward.1} parent=1 // pred_check_branch
      %18 = sbr.rel (0) target = $region17
    $region16: #{bottleneck_forward.1} parent=1 // pred_region
      _
    $region17: #{bottleneck_forward.1} parent=1 // pred_fallthru
      _
    // Predicated region
    $region18: #{bottleneck_forward.1} parent=1 // pred_check
      _
    $region19: #{bottleneck_forward.1} parent=1 // pred_check_branch
      %20 = sbr.rel (0) target = $region21
    $region20: #{bottleneck_forward.1} parent=1 // pred_region
      _
    $region21: #{bottleneck_forward.1} parent=1 // pred_fallthru
      _
    %v21 = vld [vmem:[%s2] sm:$0xff]
    %v22 = vld [vmem:[%s2 + $0x8] sm:$0xff]
    %v23 = vld [vmem:[%s2 + $0x10] sm:$0xff]
    %v24 = vld [vmem:[%s2 + $0x18] sm:$0xff]
    %v25 = vld [vmem:[%s0] sm:$0xff]
    %v26 = vld [vmem:[%s0 + $0x8] sm:$0xff]
    %vm27 = vcmask 261120
    %v29 = vsel %vm27, %v25, 0
    %v32 = vsel %vm27, %v26, 0
    %34 = vmatprep.subr.mxu0 0.0
    %35 = vmatpush1.msra.mxu0 %v21
    %36 = vmatprep.subr.mxu0 0.0
    %37 = vmatpush1.msra.mxu0 %v22
    %38 = vmatprep.subr.mxu0 0.0
    %39 = vmatpush1.msra.mxu0 %v23
    %40 = vmatprep.subr.mxu0 0.0
    %41 = vmatpush1.msra.mxu0 %v24
    %42 = vmatprep.subr.mxu0 0.0
    %43 = vmatpush1.msra.mxu0 0.0
    %44 = vmatprep.subr.mxu0 0.0
    %45 = vmatpush1.msra.mxu0 0.0
    %46 = vmatprep.subr.mxu0 0.0
    %47 = vmatpush1.msra.mxu0 0.0
    %48 = vmatprep.subr.mxu0 0.0
    %49 = vmatpush1.msra.mxu0 0.0
    %50 = vmatprep.subr.mxu0 0.0
    %51 = vmatpush1.msra.mxu0 0.0
    %52 = vmatprep.subr.mxu0 0.0
    %53 = vmatpush1.msra.mxu0 0.0
    %54 = vmatprep.subr.mxu0 0.0
    %55 = vmatpush1.msra.mxu0 0.0
    %56 = vmatprep.subr.mxu0 0.0
    %57 = vmatpush1.msra.mxu0 0.0
    %58 = vmatprep.subr.mxu0 0.0
    %59 = vmatpush1.msra.mxu0 0.0
    %60 = vmatprep.subr.mxu0 0.0
    %61 = vmatpush1.msra.mxu0 0.0
    %62 = vmatprep.subr.mxu0 0.0
    %63 = vmatpush1.msra.mxu0 0.0
    %64 = vmatprep.subr.mxu0 0.0
    %65 = vmatpush1.msra.mxu0 0.0
    %66 = vmatprep.subr.mxu0 0.0
    %67 = vmatpush1.msra.mxu0 0.0
    %68 = vmatprep.subr.mxu0 0.0
    %69 = vmatpush1.msra.mxu0 0.0
    %70 = vmatprep.subr.mxu0 0.0
    %71 = vmatpush1.msra.mxu0 0.0
    %72 = vmatprep.subr.mxu0 0.0
    %73 = vmatpush1.msra.mxu0 0.0
    %74 = vmatprep.subr.mxu0 0.0
    %75 = vmatpush1.msra.mxu0 0.0
    %76 = vmatprep.subr.mxu0 0.0
    %77 = vmatpush1.msra.mxu0 0.0
    %78 = vmatprep.subr.mxu0 0.0
    %79 = vmatpush1.msra.mxu0 0.0
    %80 = vmatprep.subr.mxu0 0.0
    %81 = vmatpush1.msra.mxu0 0.0
    %82 = vmatprep.subr.mxu0 0.0
    %83 = vmatpush1.msra.mxu0 0.0
    %84 = vmatprep.subr.mxu0 0.0
    %85 = vmatpush1.msra.mxu0 0.0
    %86 = vmatprep.subr.mxu0 0.0
    %87 = vmatpush1.msra.mxu0 0.0
    %88 = vmatprep.subr.mxu0 0.0
    %89 = vmatpush1.msra.mxu0 0.0
    %90 = vmatprep.subr.mxu0 0.0
    %91 = vmatpush1.msra.mxu0 0.0
    %92 = vmatprep.subr.mxu0 0.0
    %93 = vmatpush1.msra.mxu0 0.0
    %94 = vmatprep.subr.mxu0 0.0
    %95 = vmatpush1.msra.mxu0 0.0
    %96 = vmatprep.subr.mxu0 0.0
    %97 = vmatpush1.msra.mxu0 0.0
    %98 = vmatprep.mubr.f32.mxu0 0.0
    %99 = vmatmul.mubr.f32.gmra.mrb[0].mxu0 %v29
    %v100 = vpop.f32.mrb[0].mxu0
    %v101 = vadd.f32 0.0, %v100
    %v102 = vpop.f32.mrb[0].mxu0
    %103 = vmatprep.mubr.f32.mxu0 0.0
    %104 = vmatmul.mubr.f32.gmra.mrb[0].mxu0 %v32
    %v105 = vpop.f32.mrb[0].mxu0
    %v106 = vadd.f32 0.0, %v105
    %v107 = vpop.f32.mrb[0].mxu0
    %108 = vdwg.mxu0
    %v109 = vld [vmem:[%s3] sm:$0xff]
    %v110 = vadd.f32 %v101, %v109
    %v111 = vadd.f32 %v106, %v109
    %vm112 = vcmask 523264
    %113 = vst.msk [vmem:[#allocation2] sm:$0xff] %vm112, %v110
    %114 = vst.msk [vmem:[#allocation2 + $0x10] sm:$0xff] %vm112, %v111
    %v115 = vld [vmem:[%s1] sm:$0xff]
    %v116 = vld [vmem:[%s1 + $0x8] sm:$0xff]
    %v118 = vsel %vm27, %v115, 0
    %v121 = vsel %vm27, %v116, 0
    %123 = vmatprep.subr.mxu0 0.0
    %124 = vmatpush1.msra.mxu0 %v21
    %125 = vmatprep.subr.mxu0 0.0
    %126 = vmatpush1.msra.mxu0 %v22
    %127 = vmatprep.subr.mxu0 0.0
    %128 = vmatpush1.msra.mxu0 %v23
    %129 = vmatprep.subr.mxu0 0.0
    %130 = vmatpush1.msra.mxu0 %v24
    %131 = vmatprep.subr.mxu0 0.0
    %132 = vmatpush1.msra.mxu0 0.0
    %133 = vmatprep.subr.mxu0 0.0
    %134 = vmatpush1.msra.mxu0 0.0
    %135 = vmatprep.subr.mxu0 0.0
    %136 = vmatpush1.msra.mxu0 0.0
    %137 = vmatprep.subr.mxu0 0.0
    %138 = vmatpush1.msra.mxu0 0.0
    %139 = vmatprep.subr.mxu0 0.0
    %140 = vmatpush1.msra.mxu0 0.0
    %141 = vmatprep.subr.mxu0 0.0
    %142 = vmatpush1.msra.mxu0 0.0
    %143 = vmatprep.subr.mxu0 0.0
    %144 = vmatpush1.msra.mxu0 0.0
    %145 = vmatprep.subr.mxu0 0.0
    %146 = vmatpush1.msra.mxu0 0.0
    %147 = vmatprep.subr.mxu0 0.0
    %148 = vmatpush1.msra.mxu0 0.0
    %149 = vmatprep.subr.mxu0 0.0
    %150 = vmatpush1.msra.mxu0 0.0
    %151 = vmatprep.subr.mxu0 0.0
    %152 = vmatpush1.msra.mxu0 0.0
    %153 = vmatprep.subr.mxu0 0.0
    %154 = vmatpush1.msra.mxu0 0.0
    %155 = vmatprep.subr.mxu0 0.0
    %156 = vmatpush1.msra.mxu0 0.0
    %157 = vmatprep.subr.mxu0 0.0
    %158 = vmatpush1.msra.mxu0 0.0
    %159 = vmatprep.subr.mxu0 0.0
    %160 = vmatpush1.msra.mxu0 0.0
    %161 = vmatprep.subr.mxu0 0.0
    %162 = vmatpush1.msra.mxu0 0.0
    %163 = vmatprep.subr.mxu0 0.0
    %164 = vmatpush1.msra.mxu0 0.0
    %165 = vmatprep.subr.mxu0 0.0
    %166 = vmatpush1.msra.mxu0 0.0
    %167 = vmatprep.subr.mxu0 0.0
    %168 = vmatpush1.msra.mxu0 0.0
    %169 = vmatprep.subr.mxu0 0.0
    %170 = vmatpush1.msra.mxu0 0.0
    %171 = vmatprep.subr.mxu0 0.0
    %172 = vmatpush1.msra.mxu0 0.0
    %173 = vmatprep.subr.mxu0 0.0
    %174 = vmatpush1.msra.mxu0 0.0
    %175 = vmatprep.subr.mxu0 0.0
    %176 = vmatpush1.msra.mxu0 0.0
    %177 = vmatprep.subr.mxu0 0.0
    %178 = vmatpush1.msra.mxu0 0.0
    %179 = vmatprep.subr.mxu0 0.0
    %180 = vmatpush1.msra.mxu0 0.0
    %181 = vmatprep.subr.mxu0 0.0
    %182 = vmatpush1.msra.mxu0 0.0
    %183 = vmatprep.subr.mxu0 0.0
    %184 = vmatpush1.msra.mxu0 0.0
    %185 = vmatprep.subr.mxu0 0.0
    %186 = vmatpush1.msra.mxu0 0.0
    %187 = vmatprep.mubr.f32.mxu0 0.0
    %188 = vmatmul.mubr.f32.gmra.mrb[0].mxu0 %v118
    %v189 = vpop.f32.mrb[0].mxu0
    %v190 = vadd.f32 0.0, %v189
    %v191 = vpop.f32.mrb[0].mxu0
    %192 = vmatprep.mubr.f32.mxu0 0.0
    %193 = vmatmul.mubr.f32.gmra.mrb[0].mxu0 %v121
    %v194 = vpop.f32.mrb[0].mxu0
    %v195 = vadd.f32 0.0, %v194
    %v196 = vpop.f32.mrb[0].mxu0
    %197 = vdwg.mxu0
    %v198 = vld [vmem:[%s4] sm:$0xff]
    %v199 = vadd.f32 %v190, %v198
    %v200 = vadd.f32 %v195, %v198
    %201 = vst.msk [vmem:[#allocation2 + $0x8] sm:$0xff] %vm112, %v199
    %202 = vst.msk [vmem:[#allocation2 + $0x18] sm:$0xff] %vm112, %v200
    // Predicated region
    $region22: #{bottleneck_forward.1} parent=1 // pred_check
      _
    $region23: #{bottleneck_forward.1} parent=1 // pred_check_branch
      %204 = sbr.rel (0) target = $region25
    $region24: #{bottleneck_forward.1} parent=1 // pred_region
      %s206 = ssub.s32 512, 512
      %207 = vsyncadd [#allocation3], %s206
      %s208 = sshll.u32 [#allocation2], 4
      %s209 = int_to_ptr.vmem [resolvable:$true] %s208
      %214 = dma.vmem_to_hbm [thread:$0]  %s209, 512, %s5, [#allocation3], 128, 128, 8
    $region25: #{bottleneck_forward.1} parent=1 // pred_fallthru
      _
    // Predicated region
    $region26: #{bottleneck_forward.1} parent=1 // pred_check
      _
    $region27: #{bottleneck_forward.1} parent=1 // pred_check_branch
      %216 = sbr.rel (0) target = $region29
    $region28: #{bottleneck_forward.1} parent=1 // pred_region
      %217 = dma.done [#allocation3], 512
    $region29: #{bottleneck_forward.1} parent=1 // pred_fallthru
      _
    %218 = vsyncpa [#allocation3], 1

</llo_original>
